<compile_context>
chip_gen: v7x
topology: tpu7x:2x2x1
jax: 0.10.0
libtpu: 0.0.40
codegen_flags: <defaults>
</compile_context>

<pallas_src>
import functools

import jax
import jax.numpy as jnp
from jax.experimental import pallas as pl
from jax.experimental.pallas import tpu as pltpu


_COMPUTE_DTYPE = jnp.bfloat16   # streamed dtype for x / w (f32 accumulation)
_LANE = 128


def _spectral_mix_kernel(x_ref, w_ref, o_ref):
    """One tile of Fourier modes: batched (B,2Ci)@(2Ci,2Co) on the MXU.

    Block shapes (one grid step = one tile of modes):
      x_ref : (TM, Bp, 2*Ci)   columns = [xre | xim]           (bf16)
      w_ref : (TM, 2*Ci, 2*Co) rows    = [[wre, wim], [-wim, wre]]  (bf16)
      o_ref : (TM, Bp, 2*Co)   columns = [ore | oim]           (f32)
    """
    o_ref[...] = jax.lax.dot_general(
        x_ref[...], w_ref[...],
        dimension_numbers=(((2,), (1,)), ((0,), (0,))),   # batched over modes
        preferred_element_type=jnp.float32,
    )


def _round_up(x, m):
    return ((x + m - 1) // m) * m


def _vmem_capacity_bytes():
    try:
        return int(pltpu.get_tpu_info().vmem_capacity_bytes)
    except Exception:
        return 64 << 20     # conservative fallback: v7x per-TensorCore VMEM


def _choose_tiling(modes_padded, per_mode_bytes):
    """Pick the mode-tile TM and a matching explicit VMEM limit.

    v7x-class (small VMEM): <=~12 MiB per block set, >=4 grid steps so both
    TensorCores get >=2 pipelined steps.  v5e/v6e: ~20 MiB per set, >=2 steps
    purely for DMA/compute pipelining (single TensorCore, megacore irrelevant).
    """
    capacity = _vmem_capacity_bytes()
    small_vmem = capacity <= (96 << 20)                 # v7x-class
    budget = (12 << 20) if small_vmem else (20 << 20)   # per block set
    min_steps = 4 if small_vmem else 2

    if modes_padded % _LANE != 0:
        # Small-M case (modes_padded <= 128): one fat block, single grid step.
        tm = modes_padded
    else:
        units = modes_padded // _LANE
        cap_units = max(1, budget // (per_mode_bytes * _LANE))
        divisors = [u for u in range(1, units + 1)
                    if units % u == 0 and u <= cap_units]
        good = [u for u in divisors if units // u >= min_steps]
        tm = (max(good) if good else max(divisors)) * _LANE

    set_bytes = tm * per_mode_bytes
    vmem_limit = max(32 << 20, 2 * set_bytes + (8 << 20))   # 2x double-buffer
    vmem_limit = min(vmem_limit, int(capacity * 0.9))
    return tm, vmem_limit


def stack_weights(w_re, w_im, modes_padded, dtype=_COMPUTE_DTYPE):
    """(Ci,Co,M) re/im weights -> mode-major stacked-real (Mp, 2Ci, 2Co).

    Block form [[wre, wim], [-wim, wre]] so that
      [xre | xim] @ W = [xre*wre - xim*wim | xre*wim + xim*wre].
    Precomputed once per parameter set (padded modes carry zero weights).
    """
    top = jnp.concatenate([w_re, w_im], axis=1)          # (Ci, 2Co, M)
    bot = jnp.concatenate([-w_im, w_re], axis=1)         # (Ci, 2Co, M)
    w = jnp.concatenate([top, bot], axis=0)              # (2Ci, 2Co, M)
    w = jnp.transpose(w, (2, 0, 1))                      # (M, 2Ci, 2Co)
    m = w.shape[0]
    if modes_padded > m:
        w = jnp.pad(w, ((0, modes_padded - m), (0, 0), (0, 0)))
    return w.astype(dtype)


def spectral_mix_pallas(xre, xim, w_stacked):
    """einsum('bix,iox->box') on split real/imag tensors via MXU matmuls.

    xre/xim   : (B, Ci, M) float32
    w_stacked : (Mp, 2*Ci, 2*Co) precomputed stacked-real weight (bf16)
    returns (ore, oim), each (B, Co, M) float32.
    """
    B, Ci, M = xre.shape
    Mp, two_ci, two_co = w_stacked.shape
    Co = two_co // 2
    assert two_ci == 2 * Ci and Mp >= M

    # Pad batch to a sublane multiple so vector loads/stores are unmasked.
    sub = 16 if jnp.dtype(_COMPUTE_DTYPE).itemsize == 2 else 8
    Bp = _round_up(B, sub)

    # Mode-major stacked-real activations, streamed in bf16: (Mp, Bp, 2Ci).
    xs = jnp.concatenate([xre, xim], axis=1)             # (B, 2Ci, M)
    xs = jnp.transpose(xs, (2, 0, 1))                    # (M, B, 2Ci)
    xs = jnp.pad(xs, ((0, Mp - M), (0, Bp - B), (0, 0)))
    xs = xs.astype(_COMPUTE_DTYPE)

    cb = jnp.dtype(_COMPUTE_DTYPE).itemsize
    per_mode_bytes = Bp * two_ci * cb + two_ci * two_co * cb + Bp * two_co * 4
    TM, vmem_limit = _choose_tiling(Mp, per_mode_bytes)
    grid = Mp // TM

    flops = 2 * Mp * Bp * two_ci * two_co
    bytes_accessed = Mp * per_mode_bytes

    out = pl.pallas_call(
        _spectral_mix_kernel,
        out_shape=jax.ShapeDtypeStruct((Mp, Bp, two_co), jnp.float32),
        grid=(grid,),
        in_specs=[
            pl.BlockSpec((TM, Bp, two_ci), lambda m: (m, 0, 0)),
            pl.BlockSpec((TM, two_ci, two_co), lambda m: (m, 0, 0)),
        ],
        out_specs=pl.BlockSpec((TM, Bp, two_co), lambda m: (m, 0, 0)),
        compiler_params=pltpu.CompilerParams(
            dimension_semantics=("parallel",),
            vmem_limit_bytes=int(vmem_limit)),
        cost_estimate=pl.CostEstimate(
            flops=int(flops), transcendentals=0,
            bytes_accessed=int(bytes_accessed)),
    )(xs, w_stacked)

    # TODO(synk): when Mosaic's in-kernel rank-3 transpose support is verified
    # for this permutation, store directly in (B, 2Co, M) layout inside the
    # kernel and drop this XLA relayout.
    out = jnp.transpose(out, (1, 2, 0))                  # (Bp, 2Co, Mp)
    return out[:B, :Co, :M], out[:B, Co:, :M]            # ore, oim


@functools.partial(jax.jit, static_argnames=("modes1",))
def _spectral_conv1d_forward(x, w_stacked, *, modes1):
    B, Ci, N = x.shape
    n_freq = N // 2 + 1
    # TODO(synk): rfft/irfft have no Pallas/Mosaic primitive on TPU; the FFTs
    # stay in XLA.  The spectral channel-mixing contraction runs in Pallas.
    x_ft = jnp.fft.rfft(x.astype(jnp.float32), axis=2)   # (B, Ci, n_freq) c64
    xre = jnp.real(x_ft[:, :, :modes1]).astype(jnp.float32)
    xim = jnp.imag(x_ft[:, :, :modes1]).astype(jnp.float32)

    ore, oim = spectral_mix_pallas(xre, xim, w_stacked)

    # Zero-pad the unused high modes with a single pad (no zeros+scatter).
    ore_full = jnp.pad(ore, ((0, 0), (0, 0), (0, n_freq - modes1)))
    oim_full = jnp.pad(oim, ((0, 0), (0, 0), (0, n_freq - modes1)))
    out_ft = jax.lax.complex(ore_full, oim_full)          # (B, Co, n_freq)
    return jnp.fft.irfft(out_ft, n=N, axis=2).astype(jnp.float32)


class SpectralConv1d:
    """JAX/Pallas port of the PyTorch SpectralConv1d forward pass."""

    def __init__(self, in_channels, out_channels, modes1, key):
        # NOTE: the original torch code sizes out_ft with `in_channels`, so it
        # only runs when in_channels == out_channels; we keep that contract.
        assert in_channels == out_channels
        self.in_channels = in_channels
        self.out_channels = out_channels
        self.modes1 = modes1
        scale = 1.0 / (in_channels * out_channels)
        kr, ki = jax.random.split(key)
        # torch.rand(..., dtype=torch.cfloat): real & imag parts ~ U[0,1)
        self.w_re = (scale * jax.random.uniform(
            kr, (in_channels, out_channels, modes1))).astype(jnp.float32)
        self.w_im = (scale * jax.random.uniform(
            ki, (in_channels, out_channels, modes1))).astype(jnp.float32)

        # Precompute the mode-major stacked-real weight once (perf item #1).
        # Large M is padded to a multiple of 128 so the grid can use fat,
        # 128-aligned mode tiles instead of a TM=1 fallback.
        mp = modes1 if modes1 <= _LANE else _round_up(modes1, _LANE)
        self._modes_padded = mp
        self.w_stacked = stack_weights(self.w_re, self.w_im, mp,
                                       dtype=_COMPUTE_DTYPE)

    def __call__(self, x):
        return _spectral_conv1d_forward(x, self.w_stacked, modes1=self.modes1)


def _reference(x, w_re, w_im, modes1):
    """Pure-JAX reference mirroring the PyTorch forward (complex64)."""
    B, Ci, N = x.shape
    x_ft = jnp.fft.rfft(x.astype(jnp.float32), axis=2)
    w = (w_re + 1j * w_im).astype(jnp.complex64)
    mixed = jnp.einsum('bix,iox->box', x_ft[:, :, :modes1], w)
    out_ft = jnp.zeros((B, Ci, N // 2 + 1), dtype=jnp.complex64)
    out_ft = out_ft.at[:, :, :modes1].set(mixed)
    return jnp.fft.irfft(out_ft, n=N, axis=2).astype(jnp.float32)


if __name__ == "__main__":
    key = jax.random.PRNGKey(0)
    k_x, k_w = jax.random.split(key)

    B, C, N, modes1 = 2, 4, 64, 16            # small, consistent with the module
    x = jax.random.normal(k_x, (B, C, N), dtype=jnp.float32)

    layer = SpectralConv1d(C, C, modes1, k_w)

    out = jax.block_until_ready(layer(x))
    ref = jax.block_until_ready(_reference(x, layer.w_re, layer.w_im, modes1))

    assert out.shape == (B, C, N)
    assert out.dtype == jnp.float32
    # bf16 streaming of x/w (f32 accumulation) -> slightly looser tolerance
    # than the pure-f32 complex reference.
    assert jnp.allclose(out, ref, atol=3e-3, rtol=3e-3)

    print("KERNEL_OK")
</pallas_src>

<mosaic_0001>
module attributes {stable_mosaic.version = 11 : i64} {
  func.func @_spectral_mix_kernel(%arg0: i32, %arg1: memref<16x16x8xbf16, #tpu.memory_space<vmem>>, %arg2: memref<16x8x8xbf16, #tpu.memory_space<vmem>>, %arg3: memref<16x16x8xf32, #tpu.memory_space<vmem>>) attributes {dimension_semantics = [#tpu.dimension_semantics<parallel>], iteration_bounds = array<i64: 1>, scalar_prefetch = 0 : i64, scratch_operands = 0 : i64, tpu.core_type = #tpu.core_type<tc>, window_params = [{transform_indices = @transform_0, window_bounds = array<i64: 16, 16, 8>}, {transform_indices = @transform_1, window_bounds = array<i64: 16, 8, 8>}, {transform_indices = @transform_2, window_bounds = array<i64: 16, 16, 8>}]} {
    %c0 = arith.constant 0 : index
    %c0_0 = arith.constant 0 : index
    %c0_1 = arith.constant 0 : index
    %0 = vector.load %arg1[%c0, %c0_0, %c0_1] : memref<16x16x8xbf16, #tpu.memory_space<vmem>>, vector<16x16x8xbf16>
    %c0_2 = arith.constant 0 : index
    %c0_3 = arith.constant 0 : index
    %c0_4 = arith.constant 0 : index
    %1 = vector.load %arg2[%c0_2, %c0_3, %c0_4] : memref<16x8x8xbf16, #tpu.memory_space<vmem>>, vector<16x8x8xbf16>
    %cst = arith.constant dense<0.000000e+00> : vector<16x16x8xf32>
    %2 = tpu.matmul %0, %1, %cst {dimension_numbers = #tpu.dot_dimension_numbers<[2], [1], [1], [2], [0, 0, 0, 1, 1, 2], [0], [0]>} : vector<16x16x8xbf16>, vector<16x8x8xbf16>, vector<16x16x8xf32> -> vector<16x16x8xf32>
    %c0_5 = arith.constant 0 : index
    %c0_6 = arith.constant 0 : index
    %c0_7 = arith.constant 0 : index
    %3 = vector.load %arg3[%c0_5, %c0_6, %c0_7] : memref<16x16x8xf32, #tpu.memory_space<vmem>>, vector<16x16x8xf32>
    tpu.vector_store %arg3[%c0_5, %c0_6, %c0_7], %2 {strides = array<i32>} : memref<16x16x8xf32, #tpu.memory_space<vmem>>, vector<16x16x8xf32>,
    return
  }
  func.func @transform_0(%arg0: i32) -> (i32, i32, i32) {
    %c0_i32 = arith.constant 0 : i32
    %c0_i32_0 = arith.constant 0 : i32
    %c0_i32_1 = arith.constant 0 : i32
    return %arg0, %c0_i32, %c0_i32_0 : i32, i32, i32
  }
  func.func @transform_1(%arg0: i32) -> (i32, i32, i32) {
    %c0_i32 = arith.constant 0 : i32
    %c0_i32_0 = arith.constant 0 : i32
    %c0_i32_1 = arith.constant 0 : i32
    return %arg0, %c0_i32, %c0_i32_0 : i32, i32, i32
  }
  func.func @transform_2(%arg0: i32) -> (i32, i32, i32) {
    %c0_i32 = arith.constant 0 : i32
    %c0_i32_0 = arith.constant 0 : i32
    %c0_i32_1 = arith.constant 0 : i32
    return %arg0, %c0_i32, %c0_i32_0 : i32, i32, i32
  }
}

</mosaic_0001>

<llo_original>
// kernel: reverse.1
$region0: #{reverse.1}
  #allocation0 [shape = 's32[1]{0}', space=sflag, size = 0x4, scoped, tag = 'scoped memory for reverse.1']
  %s0 = inlined_call_operand.vmem [shape: f32[2,4,31], index: 0, kind: input, shape index: {}]
  %s1 = inlined_call_operand.vmem [shape: f32[2,4,31], index: 1, kind: output, shape index: {}]
  %s2 = scalar_lea.vmem %s0, 60
  %v3 = vld [vmem:[%s2] sm:$0x3]
  %4 = vst [vmem:[%s1] sm:$0x3] %v3
  %s5 = scalar_lea.vmem %s0, 58
  %v6 = vld [vmem:[%s5] sm:$0x3]
  %s7 = scalar_lea.vmem %s1, 2
  %8 = vst [vmem:[%s7] sm:$0x3] %v6
  %s9 = scalar_lea.vmem %s0, 56
  %v10 = vld [vmem:[%s9] sm:$0x3]
  %s11 = scalar_lea.vmem %s1, 4
  %12 = vst [vmem:[%s11] sm:$0x3] %v10
  %s13 = scalar_lea.vmem %s0, 54
  %v14 = vld [vmem:[%s13] sm:$0x3]
  %s15 = scalar_lea.vmem %s1, 6
  %16 = vst [vmem:[%s15] sm:$0x3] %v14
  %s17 = scalar_lea.vmem %s0, 52
  %v18 = vld [vmem:[%s17] sm:$0x3]
  %s19 = scalar_lea.vmem %s1, 8
  %20 = vst [vmem:[%s19] sm:$0x3] %v18
  %s21 = scalar_lea.vmem %s0, 50
  %v22 = vld [vmem:[%s21] sm:$0x3]
  %s23 = scalar_lea.vmem %s1, 10
  %24 = vst [vmem:[%s23] sm:$0x3] %v22
  %s25 = scalar_lea.vmem %s0, 48
  %v26 = vld [vmem:[%s25] sm:$0x3]
  %s27 = scalar_lea.vmem %s1, 12
  %28 = vst [vmem:[%s27] sm:$0x3] %v26
  %s29 = scalar_lea.vmem %s0, 46
  %v30 = vld [vmem:[%s29] sm:$0x3]
  %s31 = scalar_lea.vmem %s1, 14
  %32 = vst [vmem:[%s31] sm:$0x3] %v30
  %s33 = scalar_lea.vmem %s0, 44
  %v34 = vld [vmem:[%s33] sm:$0x3]
  %s35 = scalar_lea.vmem %s1, 16
  %36 = vst [vmem:[%s35] sm:$0x3] %v34
  %s37 = scalar_lea.vmem %s0, 42
  %v38 = vld [vmem:[%s37] sm:$0x3]
  %s39 = scalar_lea.vmem %s1, 18
  %40 = vst [vmem:[%s39] sm:$0x3] %v38
  %s41 = scalar_lea.vmem %s0, 40
  %v42 = vld [vmem:[%s41] sm:$0x3]
  %s43 = scalar_lea.vmem %s1, 20
  %44 = vst [vmem:[%s43] sm:$0x3] %v42
  %s45 = scalar_lea.vmem %s0, 38
  %v46 = vld [vmem:[%s45] sm:$0x3]
  %s47 = scalar_lea.vmem %s1, 22
  %48 = vst [vmem:[%s47] sm:$0x3] %v46
  %s49 = scalar_lea.vmem %s0, 36
  %v50 = vld [vmem:[%s49] sm:$0x3]
  %s51 = scalar_lea.vmem %s1, 24
  %52 = vst [vmem:[%s51] sm:$0x3] %v50
  %s53 = scalar_lea.vmem %s0, 34
  %v54 = vld [vmem:[%s53] sm:$0x3]
  %s55 = scalar_lea.vmem %s1, 26
  %56 = vst [vmem:[%s55] sm:$0x3] %v54
  %s57 = scalar_lea.vmem %s0, 32
  %v58 = vld [vmem:[%s57] sm:$0x3]
  %s59 = scalar_lea.vmem %s1, 28
  %60 = vst [vmem:[%s59] sm:$0x3] %v58
  %s61 = scalar_lea.vmem %s0, 30
  %v62 = vld [vmem:[%s61] sm:$0x3]
  %s63 = scalar_lea.vmem %s1, 30
  %64 = vst [vmem:[%s63] sm:$0x3] %v62
  %s65 = scalar_lea.vmem %s0, 28
  %v66 = vld [vmem:[%s65] sm:$0x3]
  %s67 = scalar_lea.vmem %s1, 32
  %68 = vst [vmem:[%s67] sm:$0x3] %v66
  %s69 = scalar_lea.vmem %s0, 26
  %v70 = vld [vmem:[%s69] sm:$0x3]
  %s71 = scalar_lea.vmem %s1, 34
  %72 = vst [vmem:[%s71] sm:$0x3] %v70
  %s73 = scalar_lea.vmem %s0, 24
  %v74 = vld [vmem:[%s73] sm:$0x3]
  %s75 = scalar_lea.vmem %s1, 36
  %76 = vst [vmem:[%s75] sm:$0x3] %v74
  %s77 = scalar_lea.vmem %s0, 22
  %v78 = vld [vmem:[%s77] sm:$0x3]
  %s79 = scalar_lea.vmem %s1, 38
  %80 = vst [vmem:[%s79] sm:$0x3] %v78
  %s81 = scalar_lea.vmem %s0, 20
  %v82 = vld [vmem:[%s81] sm:$0x3]
  %s83 = scalar_lea.vmem %s1, 40
  %84 = vst [vmem:[%s83] sm:$0x3] %v82
  %s85 = scalar_lea.vmem %s0, 18
  %v86 = vld [vmem:[%s85] sm:$0x3]
  %s87 = scalar_lea.vmem %s1, 42
  %88 = vst [vmem:[%s87] sm:$0x3] %v86
  %s89 = scalar_lea.vmem %s0, 16
  %v90 = vld [vmem:[%s89] sm:$0x3]
  %s91 = scalar_lea.vmem %s1, 44
  %92 = vst [vmem:[%s91] sm:$0x3] %v90
  %s93 = scalar_lea.vmem %s0, 14
  %v94 = vld [vmem:[%s93] sm:$0x3]
  %s95 = scalar_lea.vmem %s1, 46
  %96 = vst [vmem:[%s95] sm:$0x3] %v94
  %s97 = scalar_lea.vmem %s0, 12
  %v98 = vld [vmem:[%s97] sm:$0x3]
  %s99 = scalar_lea.vmem %s1, 48
  %100 = vst [vmem:[%s99] sm:$0x3] %v98
  %s101 = scalar_lea.vmem %s0, 10
  %v102 = vld [vmem:[%s101] sm:$0x3]
  %s103 = scalar_lea.vmem %s1, 50
  %104 = vst [vmem:[%s103] sm:$0x3] %v102
  %s105 = scalar_lea.vmem %s0, 8
  %v106 = vld [vmem:[%s105] sm:$0x3]
  %s107 = scalar_lea.vmem %s1, 52
  %108 = vst [vmem:[%s107] sm:$0x3] %v106
  %s109 = scalar_lea.vmem %s0, 6
  %v110 = vld [vmem:[%s109] sm:$0x3]
  %s111 = scalar_lea.vmem %s1, 54
  %112 = vst [vmem:[%s111] sm:$0x3] %v110
  %s113 = scalar_lea.vmem %s0, 4
  %v114 = vld [vmem:[%s113] sm:$0x3]
  %s115 = scalar_lea.vmem %s1, 56
  %116 = vst [vmem:[%s115] sm:$0x3] %v114
  %s117 = scalar_lea.vmem %s0, 2
  %v118 = vld [vmem:[%s117] sm:$0x3]
  %s119 = scalar_lea.vmem %s1, 58
  %120 = vst [vmem:[%s119] sm:$0x3] %v118
  %v121 = vld [vmem:[%s0] sm:$0x3]
  %s122 = scalar_lea.vmem %s1, 60
  %123 = vst [vmem:[%s122] sm:$0x3] %v121

// kernel: _spectral_conv1d_forward.1
$region0: #{_spectral_conv1d_forward.1}
  #allocation0 [shape = 'u32[]', space=smem, size = 0x4, offset = 0x4, fixed_abs, tag = 'smem constant byte address 0x4 - core index']
  #allocation1 [shape = 'u32[144,128]{1,0:T(1,128)}', space=vmem, size = 0x12000, scoped, tag = 'internal scratch']
  %s0 = inlined_call_operand.vmem [shape: bf16[16,16,8], index: 0, kind: input, shape index: {}]
  %s1 = inlined_call_operand.vmem [shape: bf16[16,8,8], index: 1, kind: input, shape index: {}]
  %s2 = inlined_call_operand.vmem [shape: f32[16,16,8], index: 2, kind: output, shape index: {}]
  %s3 = sld [smem:[#allocation0]]
  $region18: #{_spectral_conv1d_forward.1} parent=0
    _
  %s5 = ssub.s32 1, %s3
  %s6 = scalar_select 0, %s5, %s3
  // Predicated region
  $region2: #{_spectral_conv1d_forward.1} parent=0 // pred_check
    _
  $region3: #{_spectral_conv1d_forward.1} parent=0 // pred_check_branch
    %8 = sbr.rel (0) target = $region5
  $region4: #{_spectral_conv1d_forward.1} parent=0 // pred_region
    _
  $region5: #{_spectral_conv1d_forward.1} parent=0 // pred_fallthru
    _
  // Predicated region
  $region6: #{_spectral_conv1d_forward.1} parent=0 // pred_check
    _
  $region7: #{_spectral_conv1d_forward.1} parent=0 // pred_check_branch
    %10 = sbr.rel (0) target = $region9
  $region8: #{_spectral_conv1d_forward.1} parent=0 // pred_region
    _
  $region9: #{_spectral_conv1d_forward.1} parent=0 // pred_fallthru
    _
  %v12 = vld [vmem:[%s0] sm:$0xf]
  %v13 = vld [vmem:[%s0 + $0x4] sm:$0xf]
  %v14 = vld [vmem:[%s0 + $0x8] sm:$0xf]
  %v15 = vld [vmem:[%s0 + $0xc] sm:$0xf]
  %v16 = vld [vmem:[%s0 + $0x10] sm:$0xf]
  %v17 = vld [vmem:[%s0 + $0x14] sm:$0xf]
  %v18 = vld [vmem:[%s0 + $0x18] sm:$0xf]
  %v19 = vld [vmem:[%s0 + $0x1c] sm:$0xf]
  %v20 = vld [vmem:[%s0 + $0x20] sm:$0xf]
  %v21 = vld [vmem:[%s0 + $0x24] sm:$0xf]
  %v22 = vld [vmem:[%s0 + $0x28] sm:$0xf]
  %v23 = vld [vmem:[%s0 + $0x2c] sm:$0xf]
  %v24 = vld [vmem:[%s0 + $0x30] sm:$0xf]
  %v25 = vld [vmem:[%s0 + $0x34] sm:$0xf]
  %v26 = vld [vmem:[%s0 + $0x38] sm:$0xf]
  %v27 = vld [vmem:[%s0 + $0x3c] sm:$0xf]
  %v28 = vld [vmem:[%s0 + $0x40] sm:$0xf]
  %v29 = vld [vmem:[%s0 + $0x44] sm:$0xf]
  %v30 = vld [vmem:[%s0 + $0x48] sm:$0xf]
  %v31 = vld [vmem:[%s0 + $0x4c] sm:$0xf]
  %v32 = vld [vmem:[%s0 + $0x50] sm:$0xf]
  %v33 = vld [vmem:[%s0 + $0x54] sm:$0xf]
  %v34 = vld [vmem:[%s0 + $0x58] sm:$0xf]
  %v35 = vld [vmem:[%s0 + $0x5c] sm:$0xf]
  %v36 = vld [vmem:[%s0 + $0x60] sm:$0xf]
  %v37 = vld [vmem:[%s0 + $0x64] sm:$0xf]
  %v38 = vld [vmem:[%s0 + $0x68] sm:$0xf]
  %v39 = vld [vmem:[%s0 + $0x6c] sm:$0xf]
  %v40 = vld [vmem:[%s0 + $0x70] sm:$0xf]
  %v41 = vld [vmem:[%s0 + $0x74] sm:$0xf]
  %v42 = vld [vmem:[%s0 + $0x78] sm:$0xf]
  %v43 = vld [vmem:[%s0 + $0x7c] sm:$0xf]
  %v44 = vld [vmem:[%s1] sm:$0xf]
  %v45 = vld [vmem:[%s1 + $0x4] sm:$0xf]
  %v46 = vld [vmem:[%s1 + $0x8] sm:$0xf]
  %v47 = vld [vmem:[%s1 + $0xc] sm:$0xf]
  %v48 = vld [vmem:[%s1 + $0x10] sm:$0xf]
  %v49 = vld [vmem:[%s1 + $0x14] sm:$0xf]
  %v50 = vld [vmem:[%s1 + $0x18] sm:$0xf]
  %v51 = vld [vmem:[%s1 + $0x1c] sm:$0xf]
  %v52 = vld [vmem:[%s1 + $0x20] sm:$0xf]
  %v53 = vld [vmem:[%s1 + $0x24] sm:$0xf]
  %v54 = vld [vmem:[%s1 + $0x28] sm:$0xf]
  %v55 = vld [vmem:[%s1 + $0x2c] sm:$0xf]
  %v56 = vld [vmem:[%s1 + $0x30] sm:$0xf]
  %v57 = vld [vmem:[%s1 + $0x34] sm:$0xf]
  %v58 = vld [vmem:[%s1 + $0x38] sm:$0xf]
  %v59 = vld [vmem:[%s1 + $0x3c] sm:$0xf]
  %v62 = vunpack.c.l.b16 %v12
  %v63 = vunpack.c.l.b16 %v13
  %v64 = vpack.c.b16 %v63, %v62
  %vm65 = vcmask 64512
  %v67 = vsel %vm65, %v64, 0
  %vm69 = vcmask 1043456
  %v71 = vsel %vm69, %v44, 0
  %73 = vmatprep.subr.bf16.mxu0 0
  %74 = vmatpush1.bf16.msra.mxu0 %v71
  %75 = vmatprep.subr.bf16.mxu0 0
  %76 = vmatpush1.bf16.msra.mxu0 0
  %77 = vmatprep.subr.bf16.mxu0 0
  %78 = vmatpush1.bf16.msra.mxu0 0
  %79 = vmatprep.subr.bf16.mxu0 0
  %80 = vmatpush1.bf16.msra.mxu0 0
  %81 = vmatprep.subr.bf16.mxu0 0
  %82 = vmatpush1.bf16.msra.mxu0 0
  %83 = vmatprep.subr.bf16.mxu0 0
  %84 = vmatpush1.bf16.msra.mxu0 0
  %85 = vmatprep.subr.bf16.mxu0 0
  %86 = vmatpush1.bf16.msra.mxu0 0
  %87 = vmatprep.subr.bf16.mxu0 0
  %88 = vmatpush1.bf16.msra.mxu0 0
  %89 = vmatprep.subr.bf16.mxu0 0
  %90 = vmatpush1.bf16.msra.mxu0 0
  %91 = vmatprep.subr.bf16.mxu0 0
  %92 = vmatpush1.bf16.msra.mxu0 0
  %93 = vmatprep.subr.bf16.mxu0 0
  %94 = vmatpush1.bf16.msra.mxu0 0
  %95 = vmatprep.subr.bf16.mxu0 0
  %96 = vmatpush1.bf16.msra.mxu0 0
  %97 = vmatprep.subr.bf16.mxu0 0
  %98 = vmatpush1.bf16.msra.mxu0 0
  %99 = vmatprep.subr.bf16.mxu0 0
  %100 = vmatpush1.bf16.msra.mxu0 0
  %101 = vmatprep.subr.bf16.mxu0 0
  %102 = vmatpush1.bf16.msra.mxu0 0
  %103 = vmatprep.subr.bf16.mxu0 0
  %104 = vmatpush1.bf16.msra.mxu0 0
  %105 = vmatprep.mubr.bf16.mxu0 0
  %106 = vmatmul.mubr.bf16.gmra.mrb[0].mxu0 %v67
  %v107 = vpop.f32.mrb[0].mxu0
  %v108 = vadd.f32 0.0, %v107
  %v109 = vpop.f32.mrb[0].mxu0
  %v110 = vpop.f32.mrb[0].mxu0
  %v111 = vadd.f32 0.0, %v110
  %v112 = vpop.f32.mrb[0].mxu0
  %113 = vdwg.mxu0
  %v116 = vunpack.c.l.b16 %v14
  %v117 = vunpack.c.l.b16 %v15
  %v118 = vpack.c.b16 %v117, %v116
  %v120 = vsel %vm65, %v118, 0
  %v123 = vsel %vm69, %v45, 0
  %125 = vmatprep.subr.bf16.mxu0 0
  %126 = vmatpush1.bf16.msra.mxu0 %v123
  %127 = vmatprep.subr.bf16.mxu0 0
  %128 = vmatpush1.bf16.msra.mxu0 0
  %129 = vmatprep.subr.bf16.mxu0 0
  %130 = vmatpush1.bf16.msra.mxu0 0
  %131 = vmatprep.subr.bf16.mxu0 0
  %132 = vmatpush1.bf16.msra.mxu0 0
  %133 = vmatprep.subr.bf16.mxu0 0
  %134 = vmatpush1.bf16.msra.mxu0 0
  %135 = vmatprep.subr.bf16.mxu0 0
  %136 = vmatpush1.bf16.msra.mxu0 0
  %137 = vmatprep.subr.bf16.mxu0 0
  %138 = vmatpush1.bf16.msra.mxu0 0
  %139 = vmatprep.subr.bf16.mxu0 0
  %140 = vmatpush1.bf16.msra.mxu0 0
  %141 = vmatprep.subr.bf16.mxu0 0
  %142 = vmatpush1.bf16.msra.mxu0 0
  %143 = vmatprep.subr.bf16.mxu0 0
  %144 = vmatpush1.bf16.msra.mxu0 0
  %145 = vmatprep.subr.bf16.mxu0 0
  %146 = vmatpush1.bf16.msra.mxu0 0
  %147 = vmatprep.subr.bf16.mxu0 0
  %148 = vmatpush1.bf16.msra.mxu0 0
  %149 = vmatprep.subr.bf16.mxu0 0
  %150 = vmatpush1.bf16.msra.mxu0 0
  %151 = vmatprep.subr.bf16.mxu0 0
  %152 = vmatpush1.bf16.msra.mxu0 0
  %153 = vmatprep.subr.bf16.mxu0 0
  %154 = vmatpush1.bf16.msra.mxu0 0
  %155 = vmatprep.subr.bf16.mxu0 0
  %156 = vmatpush1.bf16.msra.mxu0 0
  %157 = vmatprep.mubr.bf16.mxu0 0
  %158 = vmatmul.mubr.bf16.gmra.mrb[0].mxu0 %v120
  %v159 = vpop.f32.mrb[0].mxu0
  %v160 = vadd.f32 0.0, %v159
  %v161 = vpop.f32.mrb[0].mxu0
  %v162 = vpop.f32.mrb[0].mxu0
  %v163 = vadd.f32 0.0, %v162
  %v164 = vpop.f32.mrb[0].mxu0
  %165 = vdwg.mxu0
  %v168 = vunpack.c.l.b16 %v16
  %v169 = vunpack.c.l.b16 %v17
  %v170 = vpack.c.b16 %v169, %v168
  %v172 = vsel %vm65, %v170, 0
  %v175 = vsel %vm69, %v46, 0
  %177 = vmatprep.subr.bf16.mxu0 0
  %178 = vmatpush1.bf16.msra.mxu0 %v175
  %179 = vmatprep.subr.bf16.mxu0 0
  %180 = vmatpush1.bf16.msra.mxu0 0
  %181 = vmatprep.subr.bf16.mxu0 0
  %182 = vmatpush1.bf16.msra.mxu0 0
  %183 = vmatprep.subr.bf16.mxu0 0
  %184 = vmatpush1.bf16.msra.mxu0 0
  %185 = vmatprep.subr.bf16.mxu0 0
  %186 = vmatpush1.bf16.msra.mxu0 0
  %187 = vmatprep.subr.bf16.mxu0 0
  %188 = vmatpush1.bf16.msra.mxu0 0
  %189 = vmatprep.subr.bf16.mxu0 0
  %190 = vmatpush1.bf16.msra.mxu0 0
  %191 = vmatprep.subr.bf16.mxu0 0
  %192 = vmatpush1.bf16.msra.mxu0 0
  %193 = vmatprep.subr.bf16.mxu0 0
  %194 = vmatpush1.bf16.msra.mxu0 0
  %195 = vmatprep.subr.bf16.mxu0 0
  %196 = vmatpush1.bf16.msra.mxu0 0
  %197 = vmatprep.subr.bf16.mxu0 0
  %198 = vmatpush1.bf16.msra.mxu0 0
  %199 = vmatprep.subr.bf16.mxu0 0
  %200 = vmatpush1.bf16.msra.mxu0 0
  %201 = vmatprep.subr.bf16.mxu0 0
  %202 = vmatpush1.bf16.msra.mxu0 0
  %203 = vmatprep.subr.bf16.mxu0 0
  %204 = vmatpush1.bf16.msra.mxu0 0
  %205 = vmatprep.subr.bf16.mxu0 0
  %206 = vmatpush1.bf16.msra.mxu0 0
  %207 = vmatprep.subr.bf16.mxu0 0
  %208 = vmatpush1.bf16.msra.mxu0 0
  %209 = vmatprep.mubr.bf16.mxu0 0
  %210 = vmatmul.mubr.bf16.gmra.mrb[0].mxu0 %v172
  %v211 = vpop.f32.mrb[0].mxu0
  %v212 = vadd.f32 0.0, %v211
  %v213 = vpop.f32.mrb[0].mxu0
  %v214 = vpop.f32.mrb[0].mxu0
  %v215 = vadd.f32 0.0, %v214
  %v216 = vpop.f32.mrb[0].mxu0
  %217 = vdwg.mxu0
  %v220 = vunpack.c.l.b16 %v18
  %v221 = vunpack.c.l.b16 %v19
  %v222 = vpack.c.b16 %v221, %v220
  %v224 = vsel %vm65, %v222, 0
  %v227 = vsel %vm69, %v47, 0
  %229 = vmatprep.subr.bf16.mxu0 0
  %230 = vmatpush1.bf16.msra.mxu0 %v227
  %231 = vmatprep.subr.bf16.mxu0 0
  %232 = vmatpush1.bf16.msra.mxu0 0
  %233 = vmatprep.subr.bf16.mxu0 0
  %234 = vmatpush1.bf16.msra.mxu0 0
  %235 = vmatprep.subr.bf16.mxu0 0
  %236 = vmatpush1.bf16.msra.mxu0 0
  %237 = vmatprep.subr.bf16.mxu0 0
  %238 = vmatpush1.bf16.msra.mxu0 0
  %239 = vmatprep.subr.bf16.mxu0 0
  %240 = vmatpush1.bf16.msra.mxu0 0
  %241 = vmatprep.subr.bf16.mxu0 0
  %242 = vmatpush1.bf16.msra.mxu0 0
  %243 = vmatprep.subr.bf16.mxu0 0
  %244 = vmatpush1.bf16.msra.mxu0 0
  %245 = vmatprep.subr.bf16.mxu0 0
  %246 = vmatpush1.bf16.msra.mxu0 0
  %247 = vmatprep.subr.bf16.mxu0 0
  %248 = vmatpush1.bf16.msra.mxu0 0
  %249 = vmatprep.subr.bf16.mxu0 0
  %250 = vmatpush1.bf16.msra.mxu0 0
  %251 = vmatprep.subr.bf16.mxu0 0
  %252 = vmatpush1.bf16.msra.mxu0 0
  %253 = vmatprep.subr.bf16.mxu0 0
  %254 = vmatpush1.bf16.msra.mxu0 0
  %255 = vmatprep.subr.bf16.mxu0 0
  %256 = vmatpush1.bf16.msra.mxu0 0
  %257 = vmatprep.subr.bf16.mxu0 0
  %258 = vmatpush1.bf16.msra.mxu0 0
  %259 = vmatprep.subr.bf16.mxu0 0
  %260 = vmatpush1.bf16.msra.mxu0 0
  %261 = vmatprep.mubr.bf16.mxu0 0
  %262 = vmatmul.mubr.bf16.gmra.mrb[0].mxu0 %v224
  %v263 = vpop.f32.mrb[0].mxu0
  %v264 = vadd.f32 0.0, %v263
  %v265 = vpop.f32.mrb[0].mxu0
  %v266 = vpop.f32.mrb[0].mxu0
  %v267 = vadd.f32 0.0, %v266
  %v268 = vpop.f32.mrb[0].mxu0
  %269 = vdwg.mxu0
  %v272 = vunpack.c.l.b16 %v20
  %v273 = vunpack.c.l.b16 %v21
  %v274 = vpack.c.b16 %v273, %v272
  %v276 = vsel %vm65, %v274, 0
  %v279 = vsel %vm69, %v48, 0
  %281 = vmatprep.subr.bf16.mxu0 0
  %282 = vmatpush1.bf16.msra.mxu0 %v279
  %283 = vmatprep.subr.bf16.mxu0 0
  %284 = vmatpush1.bf16.msra.mxu0 0
  %285 = vmatprep.subr.bf16.mxu0 0
  %286 = vmatpush1.bf16.msra.mxu0 0
  %287 = vmatprep.subr.bf16.mxu0 0
  %288 = vmatpush1.bf16.msra.mxu0 0
  %289 = vmatprep.subr.bf16.mxu0 0
  %290 = vmatpush1.bf16.msra.mxu0 0
  %291 = vmatprep.subr.bf16.mxu0 0
  %292 = vmatpush1.bf16.msra.mxu0 0
  %293 = vmatprep.subr.bf16.mxu0 0
  %294 = vmatpush1.bf16.msra.mxu0 0
  %295 = vmatprep.subr.bf16.mxu0 0
  %296 = vmatpush1.bf16.msra.mxu0 0
  %297 = vmatprep.subr.bf16.mxu0 0
  %298 = vmatpush1.bf16.msra.mxu0 0
  %299 = vmatprep.subr.bf16.mxu0 0
  %300 = vmatpush1.bf16.msra.mxu0 0
  %301 = vmatprep.subr.bf16.mxu0 0
  %302 = vmatpush1.bf16.msra.mxu0 0
  %303 = vmatprep.subr.bf16.mxu0 0
  %304 = vmatpush1.bf16.msra.mxu0 0
  %305 = vmatprep.subr.bf16.mxu0 0
  %306 = vmatpush1.bf16.msra.mxu0 0
  %307 = vmatprep.subr.bf16.mxu0 0
  %308 = vmatpush1.bf16.msra.mxu0 0
  %309 = vmatprep.subr.bf16.mxu0 0
  %310 = vmatpush1.bf16.msra.mxu0 0
  %311 = vmatprep.subr.bf16.mxu0 0
  %312 = vmatpush1.bf16.msra.mxu0 0
  %313 = vmatprep.mubr.bf16.mxu0 0
  %314 = vmatmul.mubr.bf16.gmra.mrb[0].mxu0 %v276
  %v315 = vpop.f32.mrb[0].mxu0
  %v316 = vadd.f32 0.0, %v315
  %v317 = vpop.f32.mrb[0].mxu0
  %v318 = vpop.f32.mrb[0].mxu0
  %v319 = vadd.f32 0.0, %v318
  %v320 = vpop.f32.mrb[0].mxu0
  %321 = vdwg.mxu0
  %v324 = vunpack.c.l.b16 %v22
  %v325 = vunpack.c.l.b16 %v23
  %v326 = vpack.c.b16 %v325, %v324
  %v328 = vsel %vm65, %v326, 0
  %v331 = vsel %vm69, %v49, 0
  %333 = vmatprep.subr.bf16.mxu0 0
  %334 = vmatpush1.bf16.msra.mxu0 %v331
  %335 = vmatprep.subr.bf16.mxu0 0
  %336 = vmatpush1.bf16.msra.mxu0 0
  %337 = vmatprep.subr.bf16.mxu0 0
  %338 = vmatpush1.bf16.msra.mxu0 0
  %339 = vmatprep.subr.bf16.mxu0 0
  %340 = vmatpush1.bf16.msra.mxu0 0
  %341 = vmatprep.subr.bf16.mxu0 0
  %342 = vmatpush1.bf16.msra.mxu0 0
  %343 = vmatprep.subr.bf16.mxu0 0
  %344 = vmatpush1.bf16.msra.mxu0 0
  %345 = vmatprep.subr.bf16.mxu0 0
  %346 = vmatpush1.bf16.msra.mxu0 0
  %347 = vmatprep.subr.bf16.mxu0 0
  %348 = vmatpush1.bf16.msra.mxu0 0
  %349 = vmatprep.subr.bf16.mxu0 0
  %350 = vmatpush1.bf16.msra.mxu0 0
  %351 = vmatprep.subr.bf16.mxu0 0
  %352 = vmatpush1.bf16.msra.mxu0 0
  %353 = vmatprep.subr.bf16.mxu0 0
  %354 = vmatpush1.bf16.msra.mxu0 0
  %355 = vmatprep.subr.bf16.mxu0 0
  %356 = vmatpush1.bf16.msra.mxu0 0
  %357 = vmatprep.subr.bf16.mxu0 0
  %358 = vmatpush1.bf16.msra.mxu0 0
  %359 = vmatprep.subr.bf16.mxu0 0
  %360 = vmatpush1.bf16.msra.mxu0 0
  %361 = vmatprep.subr.bf16.mxu0 0
  %362 = vmatpush1.bf16.msra.mxu0 0
  %363 = vmatprep.subr.bf16.mxu0 0
  %364 = vmatpush1.bf16.msra.mxu0 0
  %365 = vmatprep.mubr.bf16.mxu0 0
  %366 = vmatmul.mubr.bf16.gmra.mrb[0].mxu0 %v328
  %v367 = vpop.f32.mrb[0].mxu0
  %v368 = vadd.f32 0.0, %v367
  %v369 = vpop.f32.mrb[0].mxu0
  %v370 = vpop.f32.mrb[0].mxu0
  %v371 = vadd.f32 0.0, %v370
  %v372 = vpop.f32.mrb[0].mxu0
  %373 = vdwg.mxu0
  %v376 = vunpack.c.l.b16 %v24
  %v377 = vunpack.c.l.b16 %v25
  %v378 = vpack.c.b16 %v377, %v376
  %v380 = vsel %vm65, %v378, 0
  %v383 = vsel %vm69, %v50, 0
  %385 = vmatprep.subr.bf16.mxu0 0
  %386 = vmatpush1.bf16.msra.mxu0 %v383
  %387 = vmatprep.subr.bf16.mxu0 0
  %388 = vmatpush1.bf16.msra.mxu0 0
  %389 = vmatprep.subr.bf16.mxu0 0
  %390 = vmatpush1.bf16.msra.mxu0 0
  %391 = vmatprep.subr.bf16.mxu0 0
  %392 = vmatpush1.bf16.msra.mxu0 0
  %393 = vmatprep.subr.bf16.mxu0 0
  %394 = vmatpush1.bf16.msra.mxu0 0
  %395 = vmatprep.subr.bf16.mxu0 0
  %396 = vmatpush1.bf16.msra.mxu0 0
  %397 = vmatprep.subr.bf16.mxu0 0
  %398 = vmatpush1.bf16.msra.mxu0 0
  %399 = vmatprep.subr.bf16.mxu0 0
  %400 = vmatpush1.bf16.msra.mxu0 0
  %401 = vmatprep.subr.bf16.mxu0 0
  %402 = vmatpush1.bf16.msra.mxu0 0
  %403 = vmatprep.subr.bf16.mxu0 0
  %404 = vmatpush1.bf16.msra.mxu0 0
  %405 = vmatprep.subr.bf16.mxu0 0
  %406 = vmatpush1.bf16.msra.mxu0 0
  %407 = vmatprep.subr.bf16.mxu0 0
  %408 = vmatpush1.bf16.msra.mxu0 0
  %409 = vmatprep.subr.bf16.mxu0 0
  %410 = vmatpush1.bf16.msra.mxu0 0
  %411 = vmatprep.subr.bf16.mxu0 0
  %412 = vmatpush1.bf16.msra.mxu0 0
  %413 = vmatprep.subr.bf16.mxu0 0
  %414 = vmatpush1.bf16.msra.mxu0 0
  %415 = vmatprep.subr.bf16.mxu0 0
  %416 = vmatpush1.bf16.msra.mxu0 0
  %417 = vmatprep.mubr.bf16.mxu0 0
  %418 = vmatmul.mubr.bf16.gmra.mrb[0].mxu0 %v380
  %v419 = vpop.f32.mrb[0].mxu0
  %v420 = vadd.f32 0.0, %v419
  %v421 = vpop.f32.mrb[0].mxu0
  %v422 = vpop.f32.mrb[0].mxu0
  %v423 = vadd.f32 0.0, %v422
  %v424 = vpop.f32.mrb[0].mxu0
  %425 = vdwg.mxu0
  %v428 = vunpack.c.l.b16 %v26
  %v429 = vunpack.c.l.b16 %v27
  %v430 = vpack.c.b16 %v429, %v428
  %v432 = vsel %vm65, %v430, 0
  %v435 = vsel %vm69, %v51, 0
  %437 = vmatprep.subr.bf16.mxu0 0
  %438 = vmatpush1.bf16.msra.mxu0 %v435
  %439 = vmatprep.subr.bf16.mxu0 0
  %440 = vmatpush1.bf16.msra.mxu0 0
  %441 = vmatprep.subr.bf16.mxu0 0
  %442 = vmatpush1.bf16.msra.mxu0 0
  %443 = vmatprep.subr.bf16.mxu0 0
  %444 = vmatpush1.bf16.msra.mxu0 0
  %445 = vmatprep.subr.bf16.mxu0 0
  %446 = vmatpush1.bf16.msra.mxu0 0
  %447 = vmatprep.subr.bf16.mxu0 0
  %448 = vmatpush1.bf16.msra.mxu0 0
  %449 = vmatprep.subr.bf16.mxu0 0
  %450 = vmatpush1.bf16.msra.mxu0 0
  %451 = vmatprep.subr.bf16.mxu0 0
  %452 = vmatpush1.bf16.msra.mxu0 0
  %453 = vmatprep.subr.bf16.mxu0 0
  %454 = vmatpush1.bf16.msra.mxu0 0
  %455 = vmatprep.subr.bf16.mxu0 0
  %456 = vmatpush1.bf16.msra.mxu0 0
  %457 = vmatprep.subr.bf16.mxu0 0
  %458 = vmatpush1.bf16.msra.mxu0 0
  %459 = vmatprep.subr.bf16.mxu0 0
  %460 = vmatpush1.bf16.msra.mxu0 0
  %461 = vmatprep.subr.bf16.mxu0 0
  %462 = vmatpush1.bf16.msra.mxu0 0
  %463 = vmatprep.subr.bf16.mxu0 0
  %464 = vmatpush1.bf16.msra.mxu0 0
  %465 = vmatprep.subr.bf16.mxu0 0
  %466 = vmatpush1.bf16.msra.mxu0 0
  %467 = vmatprep.subr.bf16.mxu0 0
  %468 = vmatpush1.bf16.msra.mxu0 0
  %469 = vmatprep.mubr.bf16.mxu0 0
  %470 = vmatmul.mubr.bf16.gmra.mrb[0].mxu0 %v432
  %v471 = vpop.f32.mrb[0].mxu0
  %v472 = vadd.f32 0.0, %v471
  %v473 = vpop.f32.mrb[0].mxu0
  %v474 = vpop.f32.mrb[0].mxu0
  %v475 = vadd.f32 0.0, %v474
  %v476 = vpop.f32.mrb[0].mxu0
  %477 = vdwg.mxu0
  %v480 = vunpack.c.l.b16 %v28
  %v481 = vunpack.c.l.b16 %v29
  %v482 = vpack.c.b16 %v481, %v480
  %v484 = vsel %vm65, %v482, 0
  %v487 = vsel %vm69, %v52, 0
  %489 = vmatprep.subr.bf16.mxu0 0
  %490 = vmatpush1.bf16.msra.mxu0 %v487
  %491 = vmatprep.subr.bf16.mxu0 0
  %492 = vmatpush1.bf16.msra.mxu0 0
  %493 = vmatprep.subr.bf16.mxu0 0
  %494 = vmatpush1.bf16.msra.mxu0 0
  %495 = vmatprep.subr.bf16.mxu0 0
  %496 = vmatpush1.bf16.msra.mxu0 0
  %497 = vmatprep.subr.bf16.mxu0 0
  %498 = vmatpush1.bf16.msra.mxu0 0
  %499 = vmatprep.subr.bf16.mxu0 0
  %500 = vmatpush1.bf16.msra.mxu0 0
  %501 = vmatprep.subr.bf16.mxu0 0
  %502 = vmatpush1.bf16.msra.mxu0 0
  %503 = vmatprep.subr.bf16.mxu0 0
  %504 = vmatpush1.bf16.msra.mxu0 0
  %505 = vmatprep.subr.bf16.mxu0 0
  %506 = vmatpush1.bf16.msra.mxu0 0
  %507 = vmatprep.subr.bf16.mxu0 0
  %508 = vmatpush1.bf16.msra.mxu0 0
  %509 = vmatprep.subr.bf16.mxu0 0
  %510 = vmatpush1.bf16.msra.mxu0 0
  %511 = vmatprep.subr.bf16.mxu0 0
  %512 = vmatpush1.bf16.msra.mxu0 0
  %513 = vmatprep.subr.bf16.mxu0 0
  %514 = vmatpush1.bf16.msra.mxu0 0
  %515 = vmatprep.subr.bf16.mxu0 0
  %516 = vmatpush1.bf16.msra.mxu0 0
  %517 = vmatprep.subr.bf16.mxu0 0
  %518 = vmatpush1.bf16.msra.mxu0 0
  %519 = vmatprep.subr.bf16.mxu0 0
  %520 = vmatpush1.bf16.msra.mxu0 0
  %521 = vmatprep.mubr.bf16.mxu0 0
  %522 = vmatmul.mubr.bf16.gmra.mrb[0].mxu0 %v484
  %v523 = vpop.f32.mrb[0].mxu0
  %v524 = vadd.f32 0.0, %v523
  %v525 = vpop.f32.mrb[0].mxu0
  %v526 = vpop.f32.mrb[0].mxu0
  %v527 = vadd.f32 0.0, %v526
  %v528 = vpop.f32.mrb[0].mxu0
  %529 = vdwg.mxu0
  %v532 = vunpack.c.l.b16 %v30
  %v533 = vunpack.c.l.b16 %v31
  %v534 = vpack.c.b16 %v533, %v532
  %v536 = vsel %vm65, %v534, 0
  %v539 = vsel %vm69, %v53, 0
  %541 = vmatprep.subr.bf16.mxu0 0
  %542 = vmatpush1.bf16.msra.mxu0 %v539
  %543 = vmatprep.subr.bf16.mxu0 0
  %544 = vmatpush1.bf16.msra.mxu0 0
  %545 = vmatprep.subr.bf16.mxu0 0
  %546 = vmatpush1.bf16.msra.mxu0 0
  %547 = vmatprep.subr.bf16.mxu0 0
  %548 = vmatpush1.bf16.msra.mxu0 0
  %549 = vmatprep.subr.bf16.mxu0 0
  %550 = vmatpush1.bf16.msra.mxu0 0
  %551 = vmatprep.subr.bf16.mxu0 0
  %552 = vmatpush1.bf16.msra.mxu0 0
  %553 = vmatprep.subr.bf16.mxu0 0
  %554 = vmatpush1.bf16.msra.mxu0 0
  %555 = vmatprep.subr.bf16.mxu0 0
  %556 = vmatpush1.bf16.msra.mxu0 0
  %557 = vmatprep.subr.bf16.mxu0 0
  %558 = vmatpush1.bf16.msra.mxu0 0
  %559 = vmatprep.subr.bf16.mxu0 0
  %560 = vmatpush1.bf16.msra.mxu0 0
  %561 = vmatprep.subr.bf16.mxu0 0
  %562 = vmatpush1.bf16.msra.mxu0 0
  %563 = vmatprep.subr.bf16.mxu0 0
  %564 = vmatpush1.bf16.msra.mxu0 0
  %565 = vmatprep.subr.bf16.mxu0 0
  %566 = vmatpush1.bf16.msra.mxu0 0
  %567 = vmatprep.subr.bf16.mxu0 0
  %568 = vmatpush1.bf16.msra.mxu0 0
  %569 = vmatprep.subr.bf16.mxu0 0
  %570 = vmatpush1.bf16.msra.mxu0 0
  %571 = vmatprep.subr.bf16.mxu0 0
  %572 = vmatpush1.bf16.msra.mxu0 0
  %573 = vmatprep.mubr.bf16.mxu0 0
  %574 = vmatmul.mubr.bf16.gmra.mrb[0].mxu0 %v536
  %v575 = vpop.f32.mrb[0].mxu0
  %v576 = vadd.f32 0.0, %v575
  %v577 = vpop.f32.mrb[0].mxu0
  %v578 = vpop.f32.mrb[0].mxu0
  %v579 = vadd.f32 0.0, %v578
  %v580 = vpop.f32.mrb[0].mxu0
  %581 = vdwg.mxu0
  %v584 = vunpack.c.l.b16 %v32
  %v585 = vunpack.c.l.b16 %v33
  %v586 = vpack.c.b16 %v585, %v584
  %v588 = vsel %vm65, %v586, 0
  %v591 = vsel %vm69, %v54, 0
  %593 = vmatprep.subr.bf16.mxu0 0
  %594 = vmatpush1.bf16.msra.mxu0 %v591
  %595 = vmatprep.subr.bf16.mxu0 0
  %596 = vmatpush1.bf16.msra.mxu0 0
  %597 = vmatprep.subr.bf16.mxu0 0
  %598 = vmatpush1.bf16.msra.mxu0 0
  %599 = vmatprep.subr.bf16.mxu0 0
  %600 = vmatpush1.bf16.msra.mxu0 0
  %601 = vmatprep.subr.bf16.mxu0 0
  %602 = vmatpush1.bf16.msra.mxu0 0
  %603 = vmatprep.subr.bf16.mxu0 0
  %604 = vmatpush1.bf16.msra.mxu0 0
  %605 = vmatprep.subr.bf16.mxu0 0
  %606 = vmatpush1.bf16.msra.mxu0 0
  %607 = vmatprep.subr.bf16.mxu0 0
  %608 = vmatpush1.bf16.msra.mxu0 0
  %609 = vmatprep.subr.bf16.mxu0 0
  %610 = vmatpush1.bf16.msra.mxu0 0
  %611 = vmatprep.subr.bf16.mxu0 0
  %612 = vmatpush1.bf16.msra.mxu0 0
  %613 = vmatprep.subr.bf16.mxu0 0
  %614 = vmatpush1.bf16.msra.mxu0 0
  %615 = vmatprep.subr.bf16.mxu0 0
  %616 = vmatpush1.bf16.msra.mxu0 0
  %617 = vmatprep.subr.bf16.mxu0 0
  %618 = vmatpush1.bf16.msra.mxu0 0
  %619 = vmatprep.subr.bf16.mxu0 0
  %620 = vmatpush1.bf16.msra.mxu0 0
  %621 = vmatprep.subr.bf16.mxu0 0
  %622 = vmatpush1.bf16.msra.mxu0 0
  %623 = vmatprep.subr.bf16.mxu0 0
  %624 = vmatpush1.bf16.msra.mxu0 0
  %625 = vmatprep.mubr.bf16.mxu0 0
  %626 = vmatmul.mubr.bf16.gmra.mrb[0].mxu0 %v588
  %v627 = vpop.f32.mrb[0].mxu0
  %v628 = vadd.f32 0.0, %v627
  %v629 = vpop.f32.mrb[0].mxu0
  %v630 = vpop.f32.mrb[0].mxu0
  %v631 = vadd.f32 0.0, %v630
  %v632 = vpop.f32.mrb[0].mxu0
  %633 = vdwg.mxu0
  %v636 = vunpack.c.l.b16 %v34
  %v637 = vunpack.c.l.b16 %v35
  %v638 = vpack.c.b16 %v637, %v636
  %v640 = vsel %vm65, %v638, 0
  %v643 = vsel %vm69, %v55, 0
  %645 = vmatprep.subr.bf16.mxu0 0
  %646 = vmatpush1.bf16.msra.mxu0 %v643
  %647 = vmatprep.subr.bf16.mxu0 0
  %648 = vmatpush1.bf16.msra.mxu0 0
  %649 = vmatprep.subr.bf16.mxu0 0
  %650 = vmatpush1.bf16.msra.mxu0 0
  %651 = vmatprep.subr.bf16.mxu0 0
  %652 = vmatpush1.bf16.msra.mxu0 0
  %653 = vmatprep.subr.bf16.mxu0 0
  %654 = vmatpush1.bf16.msra.mxu0 0
  %655 = vmatprep.subr.bf16.mxu0 0
  %656 = vmatpush1.bf16.msra.mxu0 0
  %657 = vmatprep.subr.bf16.mxu0 0
  %658 = vmatpush1.bf16.msra.mxu0 0
  %659 = vmatprep.subr.bf16.mxu0 0
  %660 = vmatpush1.bf16.msra.mxu0 0
  %661 = vmatprep.subr.bf16.mxu0 0
  %662 = vmatpush1.bf16.msra.mxu0 0
  %663 = vmatprep.subr.bf16.mxu0 0
  %664 = vmatpush1.bf16.msra.mxu0 0
  %665 = vmatprep.subr.bf16.mxu0 0
  %666 = vmatpush1.bf16.msra.mxu0 0
  %667 = vmatprep.subr.bf16.mxu0 0
  %668 = vmatpush1.bf16.msra.mxu0 0
  %669 = vmatprep.subr.bf16.mxu0 0
  %670 = vmatpush1.bf16.msra.mxu0 0
  %671 = vmatprep.subr.bf16.mxu0 0
  %672 = vmatpush1.bf16.msra.mxu0 0
  %673 = vmatprep.subr.bf16.mxu0 0
  %674 = vmatpush1.bf16.msra.mxu0 0
  %675 = vmatprep.subr.bf16.mxu0 0
  %676 = vmatpush1.bf16.msra.mxu0 0
  %677 = vmatprep.mubr.bf16.mxu0 0
  %678 = vmatmul.mubr.bf16.gmra.mrb[0].mxu0 %v640
  %v679 = vpop.f32.mrb[0].mxu0
  %v680 = vadd.f32 0.0, %v679
  %v681 = vpop.f32.mrb[0].mxu0
  %v682 = vpop.f32.mrb[0].mxu0
  %v683 = vadd.f32 0.0, %v682
  %v684 = vpop.f32.mrb[0].mxu0
  %685 = vdwg.mxu0
  %v688 = vunpack.c.l.b16 %v36
  %v689 = vunpack.c.l.b16 %v37
  %v690 = vpack.c.b16 %v689, %v688
  %v692 = vsel %vm65, %v690, 0
  %v695 = vsel %vm69, %v56, 0
  %697 = vmatprep.subr.bf16.mxu0 0
  %698 = vmatpush1.bf16.msra.mxu0 %v695
  %699 = vmatprep.subr.bf16.mxu0 0
  %700 = vmatpush1.bf16.msra.mxu0 0
  %701 = vmatprep.subr.bf16.mxu0 0
  %702 = vmatpush1.bf16.msra.mxu0 0
  %703 = vmatprep.subr.bf16.mxu0 0
  %704 = vmatpush1.bf16.msra.mxu0 0
  %705 = vmatprep.subr.bf16.mxu0 0
  %706 = vmatpush1.bf16.msra.mxu0 0
  %707 = vmatprep.subr.bf16.mxu0 0
  %708 = vmatpush1.bf16.msra.mxu0 0
  %709 = vmatprep.subr.bf16.mxu0 0
  %710 = vmatpush1.bf16.msra.mxu0 0
  %711 = vmatprep.subr.bf16.mxu0 0
  %712 = vmatpush1.bf16.msra.mxu0 0
  %713 = vmatprep.subr.bf16.mxu0 0
  %714 = vmatpush1.bf16.msra.mxu0 0
  %715 = vmatprep.subr.bf16.mxu0 0
  %716 = vmatpush1.bf16.msra.mxu0 0
  %717 = vmatprep.subr.bf16.mxu0 0
  %718 = vmatpush1.bf16.msra.mxu0 0
  %719 = vmatprep.subr.bf16.mxu0 0
  %720 = vmatpush1.bf16.msra.mxu0 0
  %721 = vmatprep.subr.bf16.mxu0 0
  %722 = vmatpush1.bf16.msra.mxu0 0
  %723 = vmatprep.subr.bf16.mxu0 0
  %724 = vmatpush1.bf16.msra.mxu0 0
  %725 = vmatprep.subr.bf16.mxu0 0
  %726 = vmatpush1.bf16.msra.mxu0 0
  %727 = vmatprep.subr.bf16.mxu0 0
  %728 = vmatpush1.bf16.msra.mxu0 0
  %729 = vmatprep.mubr.bf16.mxu0 0
  %730 = vmatmul.mubr.bf16.gmra.mrb[0].mxu0 %v692
  %v731 = vpop.f32.mrb[0].mxu0
  %v732 = vadd.f32 0.0, %v731
  %v733 = vpop.f32.mrb[0].mxu0
  %v734 = vpop.f32.mrb[0].mxu0
  %v735 = vadd.f32 0.0, %v734
  %v736 = vpop.f32.mrb[0].mxu0
  %737 = vdwg.mxu0
  %v740 = vunpack.c.l.b16 %v38
  %v741 = vunpack.c.l.b16 %v39
  %v742 = vpack.c.b16 %v741, %v740
  %v744 = vsel %vm65, %v742, 0
  %v747 = vsel %vm69, %v57, 0
  %749 = vmatprep.subr.bf16.mxu0 0
  %750 = vmatpush1.bf16.msra.mxu0 %v747
  %751 = vmatprep.subr.bf16.mxu0 0
  %752 = vmatpush1.bf16.msra.mxu0 0
  %753 = vmatprep.subr.bf16.mxu0 0
  %754 = vmatpush1.bf16.msra.mxu0 0
  %755 = vmatprep.subr.bf16.mxu0 0
  %756 = vmatpush1.bf16.msra.mxu0 0
  %757 = vmatprep.subr.bf16.mxu0 0
  %758 = vmatpush1.bf16.msra.mxu0 0
  %759 = vmatprep.subr.bf16.mxu0 0
  %760 = vmatpush1.bf16.msra.mxu0 0
  %761 = vmatprep.subr.bf16.mxu0 0
  %762 = vmatpush1.bf16.msra.mxu0 0
  %763 = vmatprep.subr.bf16.mxu0 0
  %764 = vmatpush1.bf16.msra.mxu0 0
  %765 = vmatprep.subr.bf16.mxu0 0
  %766 = vmatpush1.bf16.msra.mxu0 0
  %767 = vmatprep.subr.bf16.mxu0 0
  %768 = vmatpush1.bf16.msra.mxu0 0
  %769 = vmatprep.subr.bf16.mxu0 0
  %770 = vmatpush1.bf16.msra.mxu0 0
  %771 = vmatprep.subr.bf16.mxu0 0
  %772 = vmatpush1.bf16.msra.mxu0 0
  %773 = vmatprep.subr.bf16.mxu0 0
  %774 = vmatpush1.bf16.msra.mxu0 0
  %775 = vmatprep.subr.bf16.mxu0 0
  %776 = vmatpush1.bf16.msra.mxu0 0
  %777 = vmatprep.subr.bf16.mxu0 0
  %778 = vmatpush1.bf16.msra.mxu0 0
  %779 = vmatprep.subr.bf16.mxu0 0
  %780 = vmatpush1.bf16.msra.mxu0 0
  %781 = vmatprep.mubr.bf16.mxu0 0
  %782 = vmatmul.mubr.bf16.gmra.mrb[0].mxu0 %v744
  %v783 = vpop.f32.mrb[0].mxu0
  %v784 = vadd.f32 0.0, %v783
  %v785 = vpop.f32.mrb[0].mxu0
  %v786 = vpop.f32.mrb[0].mxu0
  %v787 = vadd.f32 0.0, %v786
  %v788 = vpop.f32.mrb[0].mxu0
  %789 = vdwg.mxu0
  %v792 = vunpack.c.l.b16 %v40
  %v793 = vunpack.c.l.b16 %v41
  %v794 = vpack.c.b16 %v793, %v792
  %v796 = vsel %vm65, %v794, 0
  %v799 = vsel %vm69, %v58, 0
  %801 = vmatprep.subr.bf16.mxu0 0
  %802 = vmatpush1.bf16.msra.mxu0 %v799
  %803 = vmatprep.subr.bf16.mxu0 0
  %804 = vmatpush1.bf16.msra.mxu0 0
  %805 = vmatprep.subr.bf16.mxu0 0
  %806 = vmatpush1.bf16.msra.mxu0 0
  %807 = vmatprep.subr.bf16.mxu0 0
  %808 = vmatpush1.bf16.msra.mxu0 0
  %809 = vmatprep.subr.bf16.mxu0 0
  %810 = vmatpush1.bf16.msra.mxu0 0
  %811 = vmatprep.subr.bf16.mxu0 0
  %812 = vmatpush1.bf16.msra.mxu0 0
  %813 = vmatprep.subr.bf16.mxu0 0
  %814 = vmatpush1.bf16.msra.mxu0 0
  %815 = vmatprep.subr.bf16.mxu0 0
  %816 = vmatpush1.bf16.msra.mxu0 0
  %817 = vmatprep.subr.bf16.mxu0 0
  %818 = vmatpush1.bf16.msra.mxu0 0
  %819 = vmatprep.subr.bf16.mxu0 0
  %820 = vmatpush1.bf16.msra.mxu0 0
  %821 = vmatprep.subr.bf16.mxu0 0
  %822 = vmatpush1.bf16.msra.mxu0 0
  %823 = vmatprep.subr.bf16.mxu0 0
  %824 = vmatpush1.bf16.msra.mxu0 0
  %825 = vmatprep.subr.bf16.mxu0 0
  %826 = vmatpush1.bf16.msra.mxu0 0
  %827 = vmatprep.subr.bf16.mxu0 0
  %828 = vmatpush1.bf16.msra.mxu0 0
  %829 = vmatprep.subr.bf16.mxu0 0
  %830 = vmatpush1.bf16.msra.mxu0 0
  %831 = vmatprep.subr.bf16.mxu0 0
  %832 = vmatpush1.bf16.msra.mxu0 0
  %833 = vmatprep.mubr.bf16.mxu0 0
  %834 = vmatmul.mubr.bf16.gmra.mrb[0].mxu0 %v796
  %v835 = vpop.f32.mrb[0].mxu0
  %v836 = vadd.f32 0.0, %v835
  %v837 = vpop.f32.mrb[0].mxu0
  %v838 = vpop.f32.mrb[0].mxu0
  %v839 = vadd.f32 0.0, %v838
  %v840 = vpop.f32.mrb[0].mxu0
  %841 = vdwg.mxu0
  %v844 = vunpack.c.l.b16 %v42
  %v845 = vunpack.c.l.b16 %v43
  %v846 = vpack.c.b16 %v845, %v844
  %v848 = vsel %vm65, %v846, 0
  %v851 = vsel %vm69, %v59, 0
  %853 = vmatprep.subr.bf16.mxu0 0
  %854 = vmatpush1.bf16.msra.mxu0 %v851
  %855 = vmatprep.subr.bf16.mxu0 0
  %856 = vmatpush1.bf16.msra.mxu0 0
  %857 = vmatprep.subr.bf16.mxu0 0
  %858 = vmatpush1.bf16.msra.mxu0 0
  %859 = vmatprep.subr.bf16.mxu0 0
  %860 = vmatpush1.bf16.msra.mxu0 0
  %861 = vmatprep.subr.bf16.mxu0 0
  %862 = vmatpush1.bf16.msra.mxu0 0
  %863 = vmatprep.subr.bf16.mxu0 0
  %864 = vmatpush1.bf16.msra.mxu0 0
  %865 = vmatprep.subr.bf16.mxu0 0
  %866 = vmatpush1.bf16.msra.mxu0 0
  %867 = vmatprep.subr.bf16.mxu0 0
  %868 = vmatpush1.bf16.msra.mxu0 0
  %869 = vmatprep.subr.bf16.mxu0 0
  %870 = vmatpush1.bf16.msra.mxu0 0
  %871 = vmatprep.subr.bf16.mxu0 0
  %872 = vmatpush1.bf16.msra.mxu0 0
  %873 = vmatprep.subr.bf16.mxu0 0
  %874 = vmatpush1.bf16.msra.mxu0 0
  %875 = vmatprep.subr.bf16.mxu0 0
  %876 = vmatpush1.bf16.msra.mxu0 0
  %877 = vmatprep.subr.bf16.mxu0 0
  %878 = vmatpush1.bf16.msra.mxu0 0
  %879 = vmatprep.subr.bf16.mxu0 0
  %880 = vmatpush1.bf16.msra.mxu0 0
  %881 = vmatprep.subr.bf16.mxu0 0
  %882 = vmatpush1.bf16.msra.mxu0 0
  %883 = vmatprep.subr.bf16.mxu0 0
  %884 = vmatpush1.bf16.msra.mxu0 0
  %885 = vmatprep.mubr.bf16.mxu0 0
  %886 = vmatmul.mubr.bf16.gmra.mrb[0].mxu0 %v848
  %v887 = vpop.f32.mrb[0].mxu0
  %v888 = vadd.f32 0.0, %v887
  %v889 = vpop.f32.mrb[0].mxu0
  %v890 = vpop.f32.mrb[0].mxu0
  %v891 = vadd.f32 0.0, %v890
  %v892 = vpop.f32.mrb[0].mxu0
  %893 = vdwg.mxu0
  %894 = vst.msk [vmem:[%s2] sm:$0xff] %vm65, %v108
  %895 = vst.msk [vmem:[%s2 + $0x8] sm:$0xff] %vm65, %v111
  %896 = vst.msk [vmem:[%s2 + $0x10] sm:$0xff] %vm65, %v160
  %897 = vst.msk [vmem:[%s2 + $0x18] sm:$0xff] %vm65, %v163
  %898 = vst.msk [vmem:[%s2 + $0x20] sm:$0xff] %vm65, %v212
  %899 = vst.msk [vmem:[%s2 + $0x28] sm:$0xff] %vm65, %v215
  %900 = vst.msk [vmem:[%s2 + $0x30] sm:$0xff] %vm65, %v264
  %901 = vst.msk [vmem:[%s2 + $0x38] sm:$0xff] %vm65, %v267
  %902 = vst.msk [vmem:[%s2 + $0x40] sm:$0xff] %vm65, %v316
  %903 = vst.msk [vmem:[%s2 + $0x48] sm:$0xff] %vm65, %v319
  %904 = vst.msk [vmem:[%s2 + $0x50] sm:$0xff] %vm65, %v368
  %905 = vst.msk [vmem:[%s2 + $0x58] sm:$0xff] %vm65, %v371
  %906 = vst.msk [vmem:[%s2 + $0x60] sm:$0xff] %vm65, %v420
  %907 = vst.msk [vmem:[%s2 + $0x68] sm:$0xff] %vm65, %v423
  %908 = vst.msk [vmem:[%s2 + $0x70] sm:$0xff] %vm65, %v472
  %909 = vst.msk [vmem:[%s2 + $0x78] sm:$0xff] %vm65, %v475
  %910 = vst.msk [vmem:[%s2 + $0x80] sm:$0xff] %vm65, %v524
  %911 = vst.msk [vmem:[%s2 + $0x88] sm:$0xff] %vm65, %v527
  %912 = vst.msk [vmem:[%s2 + $0x90] sm:$0xff] %vm65, %v576
  %913 = vst.msk [vmem:[%s2 + $0x98] sm:$0xff] %vm65, %v579
  %914 = vst.msk [vmem:[%s2 + $0xa0] sm:$0xff] %vm65, %v628
  %915 = vst.msk [vmem:[%s2 + $0xa8] sm:$0xff] %vm65, %v631
  %916 = vst.msk [vmem:[%s2 + $0xb0] sm:$0xff] %vm65, %v680
  %917 = vst.msk [vmem:[%s2 + $0xb8] sm:$0xff] %vm65, %v683
  %918 = vst.msk [vmem:[%s2 + $0xc0] sm:$0xff] %vm65, %v732
  %919 = vst.msk [vmem:[%s2 + $0xc8] sm:$0xff] %vm65, %v735
  %920 = vst.msk [vmem:[%s2 + $0xd0] sm:$0xff] %vm65, %v784
  %921 = vst.msk [vmem:[%s2 + $0xd8] sm:$0xff] %vm65, %v787
  %922 = vst.msk [vmem:[%s2 + $0xe0] sm:$0xff] %vm65, %v836
  %923 = vst.msk [vmem:[%s2 + $0xe8] sm:$0xff] %vm65, %v839
  %924 = vst.msk [vmem:[%s2 + $0xf0] sm:$0xff] %vm65, %v888
  %925 = vst.msk [vmem:[%s2 + $0xf8] sm:$0xff] %vm65, %v891
  // Predicated region
  $region10: #{_spectral_conv1d_forward.1} parent=0 // pred_check
    _
  $region11: #{_spectral_conv1d_forward.1} parent=0 // pred_check_branch
    %927 = sbr.rel (0) target = $region13
  $region12: #{_spectral_conv1d_forward.1} parent=0 // pred_region
    _
  $region13: #{_spectral_conv1d_forward.1} parent=0 // pred_fallthru
    _
  // Predicated region
  $region14: #{_spectral_conv1d_forward.1} parent=0 // pred_check
    _
  $region15: #{_spectral_conv1d_forward.1} parent=0 // pred_check_branch
    %929 = sbr.rel (0) target = $region17
  $region16: #{_spectral_conv1d_forward.1} parent=0 // pred_region
    _
  $region17: #{_spectral_conv1d_forward.1} parent=0 // pred_fallthru
    _

</llo_original>
